<compile_context>
chip_gen: v7x
topology: tpu7x:2x2x1
jax: 0.10.0
libtpu: 0.0.40
codegen_flags: <defaults>
</compile_context>

<pallas_src>
import jax
import jax.numpy as jnp
import numpy as np
from jax.experimental import pallas as pl
from jax.experimental.pallas import tpu as pltpu

EMB = 64  # z_dim / embedding_dim is hard-coded to 64 in the PyTorch module


# ----------------------------------------------------------------------------
# Kernel: 3-layer MLP with pre-generated, pre-transposed weights.
# All dots are plain row-major (M,K)x(K,N) MXU passes; activations on VPU/EUP.
# ----------------------------------------------------------------------------
def _actor_mlp_kernel(xin_ref, w0t_ref, w1t_ref, w2t_ref, out_ref):
    f32 = jnp.float32
    slope = jnp.float32(0.01)                    # torch F.leaky_relu default

    h = jnp.dot(xin_ref[...], w0t_ref[...], preferred_element_type=f32)
    h = jnp.where(h >= 0, h, slope * h)
    h = jnp.dot(h, w1t_ref[...], preferred_element_type=f32)
    h = jnp.where(h >= 0, h, slope * h)
    h = jnp.dot(h, w2t_ref[...], preferred_element_type=f32)
    out_ref[...] = jnp.tanh(h)


def actor_forward(prep, x, subgoal):
    """x: (B, obs_dim), subgoal: (B, 11) -> (B, action_dim). Single pallas_call."""
    B = x.shape[0]
    xin = jnp.concatenate([x, subgoal], axis=1)  # host-side concat, fuses in XLA
    in_dim = xin.shape[1]
    action_dim = prep["w2t"].shape[1]

    # Big batch tile: amortizes the ~0.35 us/grid-step overhead; VMEM footprint
    # at bt=512 is only a few hundred KiB (f32, double-buffered).
    bt = B if B <= 512 else 512
    grid = (pl.cdiv(B, bt),)

    const = lambda shp: pl.BlockSpec(shp, lambda i: (0,) * len(shp))
    batched = lambda ncols: pl.BlockSpec((bt, ncols), lambda i: (i, 0))

    return pl.pallas_call(
        _actor_mlp_kernel,
        out_shape=jax.ShapeDtypeStruct((B, action_dim), jnp.float32),
        grid=grid,
        in_specs=[batched(in_dim),
                  const(prep["w0t"].shape),
                  const(prep["w1t"].shape),
                  const(prep["w2t"].shape)],
        out_specs=batched(action_dim),
        compiler_params=pltpu.CompilerParams(
            dimension_semantics=("parallel",)),   # no-op at grid=(1,), harmless
    )(xin, prep["w0t"], prep["w1t"], prep["w2t"])


# ----------------------------------------------------------------------------
# Parameter init (deterministic, mirrors torch.fmod(torch.randn(...), 2))
# ----------------------------------------------------------------------------
def init_params(key, obs_dim, action_dim):
    input_dim = obs_dim + 11
    ks = jax.random.split(key, 7)
    f = lambda k, shape: jnp.fmod(jax.random.normal(k, shape, dtype=jnp.float32), 2.0)
    return {
        "w1": f(ks[0], (EMB, input_dim * EMB)),
        "b1": f(ks[1], (input_dim * EMB,)),
        "w2": f(ks[2], (EMB, 1)),
        "b2": f(ks[3], (1,)),
        "z0": f(ks[4], (input_dim, EMB)),     # Embedding(obs_dim+11, obs_dim)
        "z1": f(ks[5], (input_dim, EMB)),     # Embedding(obs_dim+11, obs_dim)
        "z2": f(ks[6], (action_dim, EMB)),    # Embedding(action_dim, action_dim)
    }


def fold_params(params):
    """One-time hypernet weight generation (re-run after every param update).

    Produces the three generated layer weights in transposed
    (in_features, out_features) layout so the kernel is three plain matmuls.
    """
    input_dim = params["w1"].shape[1] // EMB

    def gen(zs):  # zs: (z_num, EMB) -> generated weight (z_num, input_dim)
        h = zs @ params["w1"] + params["b1"]          # (z_num, input_dim*EMB)
        h = h.reshape(zs.shape[0], input_dim, EMB)
        out = h @ params["w2"] + params["b2"]         # (z_num, input_dim, 1)
        return out[..., 0]                            # (z_num, input_dim)

    w0 = gen(params["z0"])                            # (input_dim, input_dim)
    w1 = gen(params["z1"])                            # (input_dim, input_dim)
    w2 = gen(params["z2"])                            # (action_dim, input_dim)
    return {"w0t": w0.T, "w1t": w1.T, "w2t": w2.T}    # (in, out) layouts


# ----------------------------------------------------------------------------
# Pure-JAX reference (mirrors the PyTorch code structure exactly, no folding)
# ----------------------------------------------------------------------------
def reference_forward(params, x, subgoal):
    input_dim = params["w1"].shape[1] // EMB
    xin = jnp.concatenate([x, subgoal], axis=1)

    def hyper(z):
        h = z @ params["w1"] + params["b1"]
        h = h.reshape(input_dim, EMB)
        out = h @ params["w2"] + params["b2"]
        return out.reshape(1, input_dim)

    def gen(zs):
        return jnp.concatenate([hyper(zs[i]) for i in range(zs.shape[0])], axis=0)

    w0, w1, w2 = gen(params["z0"]), gen(params["z1"]), gen(params["z2"])
    h = xin @ w0.T
    h = jnp.where(h >= 0, h, 0.01 * h)
    h = h @ w1.T
    h = jnp.where(h >= 0, h, 0.01 * h)
    return jnp.tanh(h @ w2.T)


if __name__ == "__main__":
    obs_dim, action_dim, batch = 21, 8, 4   # input_dim = obs_dim + 11 = 32
    key = jax.random.PRNGKey(0)
    kp, kx, kg = jax.random.split(key, 3)

    params = init_params(kp, obs_dim, action_dim)
    prep = fold_params(params)              # done once per param update

    x = jax.random.normal(kx, (batch, obs_dim), dtype=jnp.float32)
    subgoal = jax.random.normal(kg, (batch, 11), dtype=jnp.float32)

    out = actor_forward(prep, x, subgoal)
    out = jax.block_until_ready(out)

    ref = reference_forward(params, x, subgoal)
    assert out.shape == (batch, action_dim)
    np.testing.assert_allclose(np.asarray(out), np.asarray(ref), rtol=1e-5, atol=1e-5)

    print("KERNEL_OK")
</pallas_src>

<mosaic_0001>
module attributes {stable_mosaic.version = 11 : i64} {
  func.func @_actor_mlp_kernel(%arg0: i32, %arg1: memref<4x32xf32, #tpu.memory_space<vmem>>, %arg2: memref<32x32xf32, #tpu.memory_space<vmem>>, %arg3: memref<32x32xf32, #tpu.memory_space<vmem>>, %arg4: memref<32x8xf32, #tpu.memory_space<vmem>>, %arg5: memref<4x8xf32, #tpu.memory_space<vmem>>) attributes {dimension_semantics = [#tpu.dimension_semantics<parallel>], iteration_bounds = array<i64: 1>, scalar_prefetch = 0 : i64, scratch_operands = 0 : i64, tpu.core_type = #tpu.core_type<tc>, window_params = [{transform_indices = @transform_0, window_bounds = array<i64: 4, 32>}, {pipeline_mode = #tpu.pipeline_mode<synchronous>, transform_indices = @transform_1, window_bounds = array<i64: 32, 32>}, {pipeline_mode = #tpu.pipeline_mode<synchronous>, transform_indices = @transform_2, window_bounds = array<i64: 32, 32>}, {pipeline_mode = #tpu.pipeline_mode<synchronous>, transform_indices = @transform_3, window_bounds = array<i64: 32, 8>}, {transform_indices = @transform_4, window_bounds = array<i64: 4, 8>}]} {
    %c0 = arith.constant 0 : index
    %c0_0 = arith.constant 0 : index
    %0 = vector.load %arg1[%c0, %c0_0] : memref<4x32xf32, #tpu.memory_space<vmem>>, vector<4x32xf32>
    %c0_1 = arith.constant 0 : index
    %c0_2 = arith.constant 0 : index
    %1 = vector.load %arg2[%c0_1, %c0_2] : memref<32x32xf32, #tpu.memory_space<vmem>>, vector<32x32xf32>
    %cst = arith.constant dense<0.000000e+00> : vector<4x32xf32>
    %2 = tpu.matmul %0, %1, %cst {dimension_numbers = #tpu.dot_dimension_numbers<[1], [0], [0], [1], [0, 0, 1, 1], [], []>} : vector<4x32xf32>, vector<32x32xf32>, vector<4x32xf32> -> vector<4x32xf32>
    %cst_3 = arith.constant 0.000000e+00 : f32
    %3 = vector.broadcast %cst_3 : f32 to vector<4x32xf32>
    %4 = arith.cmpf oge, %2, %3 : vector<4x32xf32>
    %cst_4 = arith.constant 0.00999999977 : f32
    %5 = vector.broadcast %cst_4 : f32 to vector<4x32xf32>
    %6 = arith.mulf %5, %2 : vector<4x32xf32>
    %7 = arith.select %4, %2, %6 : vector<4x32xi1>, vector<4x32xf32>
    %c0_5 = arith.constant 0 : index
    %c0_6 = arith.constant 0 : index
    %8 = vector.load %arg3[%c0_5, %c0_6] : memref<32x32xf32, #tpu.memory_space<vmem>>, vector<32x32xf32>
    %cst_7 = arith.constant dense<0.000000e+00> : vector<4x32xf32>
    %9 = tpu.matmul %7, %8, %cst_7 {dimension_numbers = #tpu.dot_dimension_numbers<[1], [0], [0], [1], [0, 0, 1, 1], [], []>} : vector<4x32xf32>, vector<32x32xf32>, vector<4x32xf32> -> vector<4x32xf32>
    %cst_8 = arith.constant 0.000000e+00 : f32
    %10 = vector.broadcast %cst_8 : f32 to vector<4x32xf32>
    %11 = arith.cmpf oge, %9, %10 : vector<4x32xf32>
    %cst_9 = arith.constant 0.00999999977 : f32
    %12 = vector.broadcast %cst_9 : f32 to vector<4x32xf32>
    %13 = arith.mulf %12, %9 : vector<4x32xf32>
    %14 = arith.select %11, %9, %13 : vector<4x32xi1>, vector<4x32xf32>
    %c0_10 = arith.constant 0 : index
    %c0_11 = arith.constant 0 : index
    %15 = vector.load %arg4[%c0_10, %c0_11] : memref<32x8xf32, #tpu.memory_space<vmem>>, vector<32x8xf32>
    %cst_12 = arith.constant dense<0.000000e+00> : vector<4x8xf32>
    %16 = tpu.matmul %14, %15, %cst_12 {dimension_numbers = #tpu.dot_dimension_numbers<[1], [0], [0], [1], [0, 0, 1, 1], [], []>} : vector<4x32xf32>, vector<32x8xf32>, vector<4x8xf32> -> vector<4x8xf32>
    %17 = math.tanh %16 : vector<4x8xf32>
    %c0_13 = arith.constant 0 : index
    %c0_14 = arith.constant 0 : index
    %18 = vector.load %arg5[%c0_13, %c0_14] : memref<4x8xf32, #tpu.memory_space<vmem>>, vector<4x8xf32>
    tpu.vector_store %arg5[%c0_13, %c0_14], %17 {strides = array<i32>} : memref<4x8xf32, #tpu.memory_space<vmem>>, vector<4x8xf32>,
    return
  }
  func.func @transform_0(%arg0: i32) -> (i32, i32) {
    %c0_i32 = arith.constant 0 : i32
    %c0_i32_0 = arith.constant 0 : i32
    return %arg0, %c0_i32 : i32, i32
  }
  func.func @transform_1(%arg0: i32) -> (i32, i32) {
    %c0_i32 = arith.constant 0 : i32
    %c0_i32_0 = arith.constant 0 : i32
    %c0_i32_1 = arith.constant 0 : i32
    return %c0_i32, %c0_i32_0 : i32, i32
  }
  func.func @transform_2(%arg0: i32) -> (i32, i32) {
    %c0_i32 = arith.constant 0 : i32
    %c0_i32_0 = arith.constant 0 : i32
    %c0_i32_1 = arith.constant 0 : i32
    return %c0_i32, %c0_i32_0 : i32, i32
  }
  func.func @transform_3(%arg0: i32) -> (i32, i32) {
    %c0_i32 = arith.constant 0 : i32
    %c0_i32_0 = arith.constant 0 : i32
    %c0_i32_1 = arith.constant 0 : i32
    return %c0_i32, %c0_i32_0 : i32, i32
  }
  func.func @transform_4(%arg0: i32) -> (i32, i32) {
    %c0_i32 = arith.constant 0 : i32
    %c0_i32_0 = arith.constant 0 : i32
    return %arg0, %c0_i32 : i32, i32
  }
}

</mosaic_0001>

<llo_original>
// kernel: tpu_custom_call.1
$region0: #{tpu_custom_call.1}
  #allocation0 [shape = 'u32[]', space=smem, size = 0x4, offset = 0x4, fixed_abs, tag = 'smem constant byte address 0x4 - core index']
  #allocation1 [shape = 'u32[144,128]{1,0:T(1,128)}', space=vmem, size = 0x12000, scoped, tag = 'internal scratch']
  %s0 = inlined_call_operand.vmem [shape: f32[4,32], index: 0, kind: input, shape index: {}]
  %s1 = inlined_call_operand.vmem [shape: f32[32,32], index: 1, kind: input, shape index: {}]
  %s2 = inlined_call_operand.hbm [shape: f32[32,32], index: 2, kind: input, shape index: {}]
  %s3 = inlined_call_operand.vmem [shape: f32[32,8], index: 3, kind: input, shape index: {}]
  %s4 = inlined_call_operand.hbm [shape: f32[4,8], index: 4, kind: output, shape index: {}]
  %s5 = sld [smem:[#allocation0]]
  $region30: #{tpu_custom_call.1} parent=0
    _
  %s7 = ssub.s32 1, %s5
  %s8 = scalar_select 0, %s7, %s5
  $region1: #{tpu_custom_call.1} parent=0
    #allocation2 [shape = 'u8[16384]{0}', space=vmem, size = 0x4000, scoped, tag = 'input window, operand 2, single buffered']
    #allocation3 [shape = 's32[1]{0}', space=sflag, size = 0x4, scoped, tag = 'scoped memory for tpu_custom_call.1']
    #allocation4 [shape = 's32[1]{0}', space=sflag, size = 0x4, scoped, tag = 'scoped memory for tpu_custom_call.1']
    #allocation5 [shape = 'u8[2048]{0}', space=vmem, size = 0x800, scoped, tag = 'output window, operand 0, single buffered']
    %9 = vsyncpa [#allocation3], 0
    %10 = vsyncpa [#allocation4], 0
    // Predicated region
    $region2: #{tpu_custom_call.1} parent=1 // pred_check
      _
    $region3: #{tpu_custom_call.1} parent=1 // pred_check_branch
      %12 = sbr.rel (0) target = $region5
    $region4: #{tpu_custom_call.1} parent=1 // pred_region
      _
    $region5: #{tpu_custom_call.1} parent=1 // pred_fallthru
      _
    // Predicated region
    $region6: #{tpu_custom_call.1} parent=1 // pred_check
      _
    $region7: #{tpu_custom_call.1} parent=1 // pred_check_branch
      %14 = sbr.rel (0) target = $region9
    $region8: #{tpu_custom_call.1} parent=1 // pred_region
      _
    $region9: #{tpu_custom_call.1} parent=1 // pred_fallthru
      _
    // Predicated region
    $region10: #{tpu_custom_call.1} parent=1 // pred_check
      _
    $region11: #{tpu_custom_call.1} parent=1 // pred_check_branch
      %16 = sbr.rel (0) target = $region13
    $region12: #{tpu_custom_call.1} parent=1 // pred_region
      %s18 = ssub.s32 512, 512
      %19 = vsyncadd [#allocation3], %s18
      %s20 = sshll.u32 [#allocation2], 4
      %s21 = int_to_ptr.vmem [resolvable:$true] %s20
      %26 = dma.hbm_to_vmem [thread:$0]  %s2, 512, %s21, [#allocation3], 128, 128, 8
    $region13: #{tpu_custom_call.1} parent=1 // pred_fallthru
      _
    // Predicated region
    $region14: #{tpu_custom_call.1} parent=1 // pred_check
      _
    $region15: #{tpu_custom_call.1} parent=1 // pred_check_branch
      %28 = sbr.rel (0) target = $region17
    $region16: #{tpu_custom_call.1} parent=1 // pred_region
      _
    $region17: #{tpu_custom_call.1} parent=1 // pred_fallthru
      _
    // Predicated region
    $region18: #{tpu_custom_call.1} parent=1 // pred_check
      _
    $region19: #{tpu_custom_call.1} parent=1 // pred_check_branch
      %30 = sbr.rel (0) target = $region21
    $region20: #{tpu_custom_call.1} parent=1 // pred_region
      %31 = dma.done [#allocation3], 512
    $region21: #{tpu_custom_call.1} parent=1 // pred_fallthru
      _
    %v32 = vld [vmem:[%s0] sm:$0xf]
    %v33 = vld [vmem:[%s1] sm:$0xff]
    %v34 = vld [vmem:[%s1 + $0x8] sm:$0xff]
    %v35 = vld [vmem:[%s1 + $0x10] sm:$0xff]
    %v36 = vld [vmem:[%s1 + $0x18] sm:$0xff]
    %vm37 = vcmask 261120
    %v39 = vsel %vm37, %v32, 0
    %41 = vmatprep.subr.mxu0 0.0
    %42 = vmatpush1.msra.mxu0 %v33
    %43 = vmatprep.subr.mxu0 0.0
    %44 = vmatpush1.msra.mxu0 %v34
    %45 = vmatprep.subr.mxu0 0.0
    %46 = vmatpush1.msra.mxu0 %v35
    %47 = vmatprep.subr.mxu0 0.0
    %48 = vmatpush1.msra.mxu0 %v36
    %49 = vmatprep.subr.mxu0 0.0
    %50 = vmatpush1.msra.mxu0 0.0
    %51 = vmatprep.subr.mxu0 0.0
    %52 = vmatpush1.msra.mxu0 0.0
    %53 = vmatprep.subr.mxu0 0.0
    %54 = vmatpush1.msra.mxu0 0.0
    %55 = vmatprep.subr.mxu0 0.0
    %56 = vmatpush1.msra.mxu0 0.0
    %57 = vmatprep.subr.mxu0 0.0
    %58 = vmatpush1.msra.mxu0 0.0
    %59 = vmatprep.subr.mxu0 0.0
    %60 = vmatpush1.msra.mxu0 0.0
    %61 = vmatprep.subr.mxu0 0.0
    %62 = vmatpush1.msra.mxu0 0.0
    %63 = vmatprep.subr.mxu0 0.0
    %64 = vmatpush1.msra.mxu0 0.0
    %65 = vmatprep.subr.mxu0 0.0
    %66 = vmatpush1.msra.mxu0 0.0
    %67 = vmatprep.subr.mxu0 0.0
    %68 = vmatpush1.msra.mxu0 0.0
    %69 = vmatprep.subr.mxu0 0.0
    %70 = vmatpush1.msra.mxu0 0.0
    %71 = vmatprep.subr.mxu0 0.0
    %72 = vmatpush1.msra.mxu0 0.0
    %73 = vmatprep.subr.mxu0 0.0
    %74 = vmatpush1.msra.mxu0 0.0
    %75 = vmatprep.subr.mxu0 0.0
    %76 = vmatpush1.msra.mxu0 0.0
    %77 = vmatprep.subr.mxu0 0.0
    %78 = vmatpush1.msra.mxu0 0.0
    %79 = vmatprep.subr.mxu0 0.0
    %80 = vmatpush1.msra.mxu0 0.0
    %81 = vmatprep.subr.mxu0 0.0
    %82 = vmatpush1.msra.mxu0 0.0
    %83 = vmatprep.subr.mxu0 0.0
    %84 = vmatpush1.msra.mxu0 0.0
    %85 = vmatprep.subr.mxu0 0.0
    %86 = vmatpush1.msra.mxu0 0.0
    %87 = vmatprep.subr.mxu0 0.0
    %88 = vmatpush1.msra.mxu0 0.0
    %89 = vmatprep.subr.mxu0 0.0
    %90 = vmatpush1.msra.mxu0 0.0
    %91 = vmatprep.subr.mxu0 0.0
    %92 = vmatpush1.msra.mxu0 0.0
    %93 = vmatprep.subr.mxu0 0.0
    %94 = vmatpush1.msra.mxu0 0.0
    %95 = vmatprep.subr.mxu0 0.0
    %96 = vmatpush1.msra.mxu0 0.0
    %97 = vmatprep.subr.mxu0 0.0
    %98 = vmatpush1.msra.mxu0 0.0
    %99 = vmatprep.subr.mxu0 0.0
    %100 = vmatpush1.msra.mxu0 0.0
    %101 = vmatprep.subr.mxu0 0.0
    %102 = vmatpush1.msra.mxu0 0.0
    %103 = vmatprep.subr.mxu0 0.0
    %104 = vmatpush1.msra.mxu0 0.0
    %105 = vmatprep.mubr.f32.mxu0 0.0
    %106 = vmatmul.mubr.f32.gmra.mrb[0].mxu0 %v39
    %v107 = vpop.f32.mrb[0].mxu0
    %v108 = vadd.f32 0.0, %v107
    %v109 = vpop.f32.mrb[0].mxu0
    %110 = vdwg.mxu0
    %vm111 = vcmp.ge.f32.partialorder %v108, 0.0
    %v112 = vmul.f32 %v108, 0.01
    %v113 = vsel %vm111, %v108, %v112
    %v114 = vld [vmem:[#allocation2] sm:$0xff]
    %v115 = vld [vmem:[#allocation2 + $0x8] sm:$0xff]
    %v116 = vld [vmem:[#allocation2 + $0x10] sm:$0xff]
    %v117 = vld [vmem:[#allocation2 + $0x18] sm:$0xff]
    %v119 = vsel %vm37, %v113, 0
    %121 = vmatprep.subr.mxu0 0.0
    %122 = vmatpush1.msra.mxu0 %v114
    %123 = vmatprep.subr.mxu0 0.0
    %124 = vmatpush1.msra.mxu0 %v115
    %125 = vmatprep.subr.mxu0 0.0
    %126 = vmatpush1.msra.mxu0 %v116
    %127 = vmatprep.subr.mxu0 0.0
    %128 = vmatpush1.msra.mxu0 %v117
    %129 = vmatprep.subr.mxu0 0.0
    %130 = vmatpush1.msra.mxu0 0.0
    %131 = vmatprep.subr.mxu0 0.0
    %132 = vmatpush1.msra.mxu0 0.0
    %133 = vmatprep.subr.mxu0 0.0
    %134 = vmatpush1.msra.mxu0 0.0
    %135 = vmatprep.subr.mxu0 0.0
    %136 = vmatpush1.msra.mxu0 0.0
    %137 = vmatprep.subr.mxu0 0.0
    %138 = vmatpush1.msra.mxu0 0.0
    %139 = vmatprep.subr.mxu0 0.0
    %140 = vmatpush1.msra.mxu0 0.0
    %141 = vmatprep.subr.mxu0 0.0
    %142 = vmatpush1.msra.mxu0 0.0
    %143 = vmatprep.subr.mxu0 0.0
    %144 = vmatpush1.msra.mxu0 0.0
    %145 = vmatprep.subr.mxu0 0.0
    %146 = vmatpush1.msra.mxu0 0.0
    %147 = vmatprep.subr.mxu0 0.0
    %148 = vmatpush1.msra.mxu0 0.0
    %149 = vmatprep.subr.mxu0 0.0
    %150 = vmatpush1.msra.mxu0 0.0
    %151 = vmatprep.subr.mxu0 0.0
    %152 = vmatpush1.msra.mxu0 0.0
    %153 = vmatprep.subr.mxu0 0.0
    %154 = vmatpush1.msra.mxu0 0.0
    %155 = vmatprep.subr.mxu0 0.0
    %156 = vmatpush1.msra.mxu0 0.0
    %157 = vmatprep.subr.mxu0 0.0
    %158 = vmatpush1.msra.mxu0 0.0
    %159 = vmatprep.subr.mxu0 0.0
    %160 = vmatpush1.msra.mxu0 0.0
    %161 = vmatprep.subr.mxu0 0.0
    %162 = vmatpush1.msra.mxu0 0.0
    %163 = vmatprep.subr.mxu0 0.0
    %164 = vmatpush1.msra.mxu0 0.0
    %165 = vmatprep.subr.mxu0 0.0
    %166 = vmatpush1.msra.mxu0 0.0
    %167 = vmatprep.subr.mxu0 0.0
    %168 = vmatpush1.msra.mxu0 0.0
    %169 = vmatprep.subr.mxu0 0.0
    %170 = vmatpush1.msra.mxu0 0.0
    %171 = vmatprep.subr.mxu0 0.0
    %172 = vmatpush1.msra.mxu0 0.0
    %173 = vmatprep.subr.mxu0 0.0
    %174 = vmatpush1.msra.mxu0 0.0
    %175 = vmatprep.subr.mxu0 0.0
    %176 = vmatpush1.msra.mxu0 0.0
    %177 = vmatprep.subr.mxu0 0.0
    %178 = vmatpush1.msra.mxu0 0.0
    %179 = vmatprep.subr.mxu0 0.0
    %180 = vmatpush1.msra.mxu0 0.0
    %181 = vmatprep.subr.mxu0 0.0
    %182 = vmatpush1.msra.mxu0 0.0
    %183 = vmatprep.subr.mxu0 0.0
    %184 = vmatpush1.msra.mxu0 0.0
    %185 = vmatprep.mubr.f32.mxu0 0.0
    %186 = vmatmul.mubr.f32.gmra.mrb[0].mxu0 %v119
    %v187 = vpop.f32.mrb[0].mxu0
    %v188 = vadd.f32 0.0, %v187
    %v189 = vpop.f32.mrb[0].mxu0
    %190 = vdwg.mxu0
    %vm191 = vcmp.ge.f32.partialorder %v188, 0.0
    %v192 = vmul.f32 %v188, 0.01
    %v193 = vsel %vm191, %v188, %v192
    %v194 = vld [vmem:[%s3] sm:$0xff]
    %v195 = vld [vmem:[%s3 + $0x8] sm:$0xff]
    %v196 = vld [vmem:[%s3 + $0x10] sm:$0xff]
    %v197 = vld [vmem:[%s3 + $0x18] sm:$0xff]
    %v199 = vsel %vm37, %v193, 0
    %201 = vmatprep.subr.mxu0 0.0
    %202 = vmatpush1.msra.mxu0 %v194
    %203 = vmatprep.subr.mxu0 0.0
    %204 = vmatpush1.msra.mxu0 %v195
    %205 = vmatprep.subr.mxu0 0.0
    %206 = vmatpush1.msra.mxu0 %v196
    %207 = vmatprep.subr.mxu0 0.0
    %208 = vmatpush1.msra.mxu0 %v197
    %209 = vmatprep.subr.mxu0 0.0
    %210 = vmatpush1.msra.mxu0 0.0
    %211 = vmatprep.subr.mxu0 0.0
    %212 = vmatpush1.msra.mxu0 0.0
    %213 = vmatprep.subr.mxu0 0.0
    %214 = vmatpush1.msra.mxu0 0.0
    %215 = vmatprep.subr.mxu0 0.0
    %216 = vmatpush1.msra.mxu0 0.0
    %217 = vmatprep.subr.mxu0 0.0
    %218 = vmatpush1.msra.mxu0 0.0
    %219 = vmatprep.subr.mxu0 0.0
    %220 = vmatpush1.msra.mxu0 0.0
    %221 = vmatprep.subr.mxu0 0.0
    %222 = vmatpush1.msra.mxu0 0.0
    %223 = vmatprep.subr.mxu0 0.0
    %224 = vmatpush1.msra.mxu0 0.0
    %225 = vmatprep.subr.mxu0 0.0
    %226 = vmatpush1.msra.mxu0 0.0
    %227 = vmatprep.subr.mxu0 0.0
    %228 = vmatpush1.msra.mxu0 0.0
    %229 = vmatprep.subr.mxu0 0.0
    %230 = vmatpush1.msra.mxu0 0.0
    %231 = vmatprep.subr.mxu0 0.0
    %232 = vmatpush1.msra.mxu0 0.0
    %233 = vmatprep.subr.mxu0 0.0
    %234 = vmatpush1.msra.mxu0 0.0
    %235 = vmatprep.subr.mxu0 0.0
    %236 = vmatpush1.msra.mxu0 0.0
    %237 = vmatprep.subr.mxu0 0.0
    %238 = vmatpush1.msra.mxu0 0.0
    %239 = vmatprep.subr.mxu0 0.0
    %240 = vmatpush1.msra.mxu0 0.0
    %241 = vmatprep.subr.mxu0 0.0
    %242 = vmatpush1.msra.mxu0 0.0
    %243 = vmatprep.subr.mxu0 0.0
    %244 = vmatpush1.msra.mxu0 0.0
    %245 = vmatprep.subr.mxu0 0.0
    %246 = vmatpush1.msra.mxu0 0.0
    %247 = vmatprep.subr.mxu0 0.0
    %248 = vmatpush1.msra.mxu0 0.0
    %249 = vmatprep.subr.mxu0 0.0
    %250 = vmatpush1.msra.mxu0 0.0
    %251 = vmatprep.subr.mxu0 0.0
    %252 = vmatpush1.msra.mxu0 0.0
    %253 = vmatprep.subr.mxu0 0.0
    %254 = vmatpush1.msra.mxu0 0.0
    %255 = vmatprep.subr.mxu0 0.0
    %256 = vmatpush1.msra.mxu0 0.0
    %257 = vmatprep.subr.mxu0 0.0
    %258 = vmatpush1.msra.mxu0 0.0
    %259 = vmatprep.subr.mxu0 0.0
    %260 = vmatpush1.msra.mxu0 0.0
    %261 = vmatprep.subr.mxu0 0.0
    %262 = vmatpush1.msra.mxu0 0.0
    %263 = vmatprep.subr.mxu0 0.0
    %264 = vmatpush1.msra.mxu0 0.0
    %265 = vmatprep.mubr.f32.mxu0 0.0
    %266 = vmatmul.mubr.f32.gmra.mrb[0].mxu0 %v199
    %v267 = vpop.f32.mrb[0].mxu0
    %v268 = vadd.f32 0.0, %v267
    %v269 = vpop.f32.mrb[0].mxu0
    %270 = vdwg.mxu0
    %v271 = vtanh.pop %v268
    %vm272 = vcmask 60416
    %273 = vst.msk [vmem:[#allocation5] sm:$0xf] %vm272, %v271
    // Predicated region
    $region22: #{tpu_custom_call.1} parent=1 // pred_check
      _
    $region23: #{tpu_custom_call.1} parent=1 // pred_check_branch
      %275 = sbr.rel (0) target = $region25
    $region24: #{tpu_custom_call.1} parent=1 // pred_region
      %s277 = ssub.s32 64, 64
      %278 = vsyncadd [#allocation4], %s277
      %s280 = sshll.u32 [#allocation5], 4
      %s281 = int_to_ptr.vmem [resolvable:$true] %s280
      %283 = dma.vmem_to_hbm [thread:$0]  %s281, 64, %s4, [#allocation4]
    $region25: #{tpu_custom_call.1} parent=1 // pred_fallthru
      _
    // Predicated region
    $region26: #{tpu_custom_call.1} parent=1 // pred_check
      _
    $region27: #{tpu_custom_call.1} parent=1 // pred_check_branch
      %285 = sbr.rel (0) target = $region29
    $region28: #{tpu_custom_call.1} parent=1 // pred_region
      %286 = dma.done [#allocation4], 64
    $region29: #{tpu_custom_call.1} parent=1 // pred_fallthru
      _
    %287 = vsyncpa [#allocation3], 1
    %288 = vsyncpa [#allocation4], 1

</llo_original>
